<compile_context>
chip_gen: v6e
topology: v6e:2x2x1
jax: 0.10.0
libtpu: 0.0.40
codegen_flags: <defaults>
</compile_context>

<pallas_src>
import functools

import jax
import jax.numpy as jnp
from jax import lax
from jax.experimental import pallas as pl
from jax.experimental.pallas import tpu as pltpu


_LANES = 512      # lane-dense last dim (multiple of 128)
_TM_MAX = 1024    # max rows per tile -> 2 MiB f32 per input tile
_NCORES = 2       # leading "parallel" grid axis (uses both TensorCores on v7x)


def _recon_sum_kernel(x_ref, d_ref, out_ref, acc_ref, *, use_bce, tm):
    """Streams (tm, _LANES) tiles, accumulating the raw element-loss sum.

    Grid = (core, tile).  acc_ref is a per-core VMEM accumulator: zeroed at
    tile 0, added into every step, folded and written out at the last tile.
    """
    i = pl.program_id(1)

    @pl.when(i == 0)
    def _():
        acc_ref[...] = jnp.zeros_like(acc_ref)

    t = x_ref[...].astype(jnp.float32)   # target
    p = d_ref[...].astype(jnp.float32)   # decoder output (probabilities)

    if use_bce:
        # torch.nn.BCELoss clamps the log terms at -100.
        log_p = jnp.maximum(jnp.log(p), -100.0)
        log_1mp = jnp.maximum(jnp.log(1.0 - p), -100.0)
        elem = -(t * log_p + (1.0 - t) * log_1mp)
    else:
        diff = p - t
        elem = diff * diff

    # Raw sums only; the 1/total scale is applied once in the wrapper.
    acc_ref[...] += elem

    @pl.when(i == pl.num_programs(1) - 1)
    def _():
        # Fold the (tm, LANES) accumulator down to one (8, LANES) block.
        # Runs once per core; tile-aligned 8-row slices, no cross-lane reduce.
        def fold(j, f):
            off = pl.multiple_of(j * 8, 8)
            return f + acc_ref[pl.ds(off, 8), :]

        folded = lax.fori_loop(1, tm // 8, fold, acc_ref[0:8, :])
        out_ref[0] = folded


def _round_up(a, b):
    return ((a + b - 1) // b) * b


def vae_loss(x, decoder_out, mu, logvar, *, reduction="mean", alpha=1.0,
             use_bce=True):
    if reduction not in ("mean", "sum"):
        raise ValueError("Valid values for the reduction param are `mean`, `sum`")

    total = int(x.size)                       # reconstruction element count
    xf = x.reshape(-1)
    df = decoder_out.reshape(-1)

    # Lane-dense layout: rows of width _LANES, split across _NCORES cores,
    # tiled in (tm, _LANES) blocks with remainder handled by zero padding.
    rows_needed = pl.cdiv(total, _LANES)
    rows_per_core = pl.cdiv(rows_needed, _NCORES)
    tm = min(_TM_MAX, _round_up(rows_per_core, 8))
    tiles_per_core = pl.cdiv(rows_per_core, tm)
    padded_rows = _NCORES * tiles_per_core * tm
    pad = padded_rows * _LANES - total
    if pad:
        # Zero padding -> zero per-element loss in both BCE and MSE paths.
        xf = jnp.pad(xf, (0, pad))
        df = jnp.pad(df, (0, pad))
    x2 = xf.reshape(padded_rows, _LANES)
    d2 = df.reshape(padded_rows, _LANES)

    kernel = functools.partial(_recon_sum_kernel, use_bce=use_bce, tm=tm)

    partials = pl.pallas_call(
        kernel,
        out_shape=jax.ShapeDtypeStruct((_NCORES, 8, _LANES), jnp.float32),
        grid_spec=pltpu.PrefetchScalarGridSpec(
            num_scalar_prefetch=0,
            grid=(_NCORES, tiles_per_core),
            in_specs=[
                pl.BlockSpec((tm, _LANES),
                             lambda c, i: (c * tiles_per_core + i, 0)),
                pl.BlockSpec((tm, _LANES),
                             lambda c, i: (c * tiles_per_core + i, 0)),
            ],
            out_specs=pl.BlockSpec((1, 8, _LANES), lambda c, i: (c, 0, 0)),
            scratch_shapes=[pltpu.VMEM((tm, _LANES), jnp.float32)],
        ),
        compiler_params=pltpu.CompilerParams(
            dimension_semantics=("parallel", "arbitrary"),
            vmem_limit_bytes=32 * 1024 * 1024,
        ),
    )(x2, d2)

    # 'mean' reduction of the BCE/MSE reconstruction loss: single scale here.
    recon = jnp.sum(partials) / jnp.float32(total)

    # KL term is O(B*Z) — negligible next to the reconstruction stream, so it
    # is computed in plain JAX (frees two kernel inputs / VMEM buffers).
    mu32 = mu.astype(jnp.float32)
    lv32 = logvar.astype(jnp.float32)
    kl = -0.5 * jnp.sum(1.0 + lv32 - mu32 * mu32 - jnp.exp(lv32))

    loss = recon + jnp.float32(alpha) * kl
    # The PyTorch forward produces a scalar, so torch.mean(loss) == loss for
    # both 'mean' and 'sum' reductions; return it directly.
    return loss


def _reference(x, decoder_out, mu, logvar, alpha=1.0, use_bce=True):
    """Pure-JAX reference for correctness checking."""
    x = x.astype(jnp.float32)
    p = decoder_out.astype(jnp.float32)
    if use_bce:
        log_p = jnp.maximum(jnp.log(p), -100.0)
        log_1mp = jnp.maximum(jnp.log(1.0 - p), -100.0)
        recon = jnp.mean(-(x * log_p + (1.0 - x) * log_1mp))
    else:
        recon = jnp.mean((p - x) ** 2)
    kl = -0.5 * jnp.sum(1.0 + logvar - mu * mu - jnp.exp(logvar))
    return recon + alpha * kl


if __name__ == "__main__":
    key = jax.random.PRNGKey(0)
    k1, k2, k3, k4 = jax.random.split(key, 4)

    B, C, H, W = 2, 4, 16, 16   # NCHW, like the PyTorch module's conv inputs
    Z = 32                      # latent dimension for mu / logvar

    x = jax.random.uniform(k1, (B, C, H, W), dtype=jnp.float32)          # targets in [0, 1]
    decoder_out = jax.nn.sigmoid(jax.random.normal(k2, (B, C, H, W)))    # probs in (0, 1)
    mu = jax.random.normal(k3, (B, Z), dtype=jnp.float32)
    logvar = jax.random.normal(k4, (B, Z), dtype=jnp.float32) * 0.1

    # BCE path
    loss = jax.block_until_ready(
        vae_loss(x, decoder_out, mu, logvar, reduction="mean",
                 alpha=1.0, use_bce=True))
    ref = _reference(x, decoder_out, mu, logvar, alpha=1.0, use_bce=True)
    assert jnp.allclose(loss, ref, rtol=1e-5, atol=1e-5), (loss, ref)

    # MSE path
    loss_mse = jax.block_until_ready(
        vae_loss(x, decoder_out, mu, logvar, use_bce=False))
    ref_mse = _reference(x, decoder_out, mu, logvar, use_bce=False)
    assert jnp.allclose(loss_mse, ref_mse, rtol=1e-5, atol=1e-5), (loss_mse, ref_mse)

    print("KERNEL_OK")
</pallas_src>

<mosaic_0001>
module attributes {stable_mosaic.version = 11 : i64} {
  func.func @_recon_sum_kernel(%arg0: i32, %arg1: i32, %arg2: memref<8x512xf32, #tpu.memory_space<vmem>>, %arg3: memref<8x512xf32, #tpu.memory_space<vmem>>, %arg4: memref<1x8x512xf32, #tpu.memory_space<vmem>>, %arg5: memref<8x512xf32, #tpu.memory_space<vmem>>) attributes {dimension_semantics = [#tpu.dimension_semantics<parallel>, #tpu.dimension_semantics<arbitrary>], iteration_bounds = array<i64: 2, 1>, scalar_prefetch = 0 : i64, scratch_operands = 1 : i64, tpu.core_type = #tpu.core_type<tc>, window_params = [{transform_indices = @transform_0, window_bounds = array<i64: 8, 512>}, {transform_indices = @transform_1, window_bounds = array<i64: 8, 512>}, {transform_indices = @transform_2, window_bounds = array<i64: 1, 8, 512>}]} {
    %c0_i32 = arith.constant 0 : i32
    %0 = arith.cmpi eq, %arg1, %c0_i32 : i32
    %1 = arith.extui %0 : i1 to i32
    %c0_i32_0 = arith.constant 0 : i32
    %2 = arith.cmpi ne, %1, %c0_i32_0 : i32
    scf.if %2 {
      %cst_14 = arith.constant 0.000000e+00 : f32
      %26 = vector.broadcast %cst_14 : f32 to vector<8x512xf32>
      %c0_15 = arith.constant 0 : index
      %c0_16 = arith.constant 0 : index
      %27 = vector.load %arg5[%c0_15, %c0_16] : memref<8x512xf32, #tpu.memory_space<vmem>>, vector<8x512xf32>
      tpu.vector_store %arg5[%c0_15, %c0_16], %26 {strides = array<i32>} : memref<8x512xf32, #tpu.memory_space<vmem>>, vector<8x512xf32>,
    } else {
    }
    %c0 = arith.constant 0 : index
    %c0_1 = arith.constant 0 : index
    %3 = vector.load %arg2[%c0, %c0_1] : memref<8x512xf32, #tpu.memory_space<vmem>>, vector<8x512xf32>
    %c0_2 = arith.constant 0 : index
    %c0_3 = arith.constant 0 : index
    %4 = vector.load %arg3[%c0_2, %c0_3] : memref<8x512xf32, #tpu.memory_space<vmem>>, vector<8x512xf32>
    %5 = math.log %4 : vector<8x512xf32>
    %cst = arith.constant -1.000000e+02 : f32
    %6 = vector.broadcast %cst : f32 to vector<8x512xf32>
    %7 = arith.maximumf %5, %6 : vector<8x512xf32>
    %cst_4 = arith.constant 1.000000e+00 : f32
    %8 = vector.broadcast %cst_4 : f32 to vector<8x512xf32>
    %9 = arith.subf %8, %4 : vector<8x512xf32>
    %10 = math.log %9 : vector<8x512xf32>
    %cst_5 = arith.constant -1.000000e+02 : f32
    %11 = vector.broadcast %cst_5 : f32 to vector<8x512xf32>
    %12 = arith.maximumf %10, %11 : vector<8x512xf32>
    %13 = arith.mulf %3, %7 : vector<8x512xf32>
    %cst_6 = arith.constant 1.000000e+00 : f32
    %14 = vector.broadcast %cst_6 : f32 to vector<8x512xf32>
    %15 = arith.subf %14, %3 : vector<8x512xf32>
    %16 = arith.mulf %15, %12 : vector<8x512xf32>
    %17 = arith.addf %13, %16 : vector<8x512xf32>
    %cst_7 = arith.constant 0.000000e+00 : f32
    %18 = vector.broadcast %cst_7 : f32 to vector<8x512xf32>
    %19 = arith.subf %18, %17 : vector<8x512xf32>
    %c0_8 = arith.constant 0 : index
    %c0_9 = arith.constant 0 : index
    %20 = vector.load %arg5[%c0_8, %c0_9] : memref<8x512xf32, #tpu.memory_space<vmem>>, vector<8x512xf32>
    %21 = arith.addf %20, %19 : vector<8x512xf32>
    %c0_10 = arith.constant 0 : index
    %c0_11 = arith.constant 0 : index
    %22 = vector.load %arg5[%c0_10, %c0_11] : memref<8x512xf32, #tpu.memory_space<vmem>>, vector<8x512xf32>
    tpu.vector_store %arg5[%c0_10, %c0_11], %21 {strides = array<i32>} : memref<8x512xf32, #tpu.memory_space<vmem>>, vector<8x512xf32>,
    %c0_i32_12 = arith.constant 0 : i32
    %23 = arith.cmpi eq, %arg1, %c0_i32_12 : i32
    %24 = arith.extui %23 : i1 to i32
    %c0_i32_13 = arith.constant 0 : i32
    %25 = arith.cmpi ne, %24, %c0_i32_13 : i32
    scf.if %25 {
      %c0_14 = arith.constant 0 : index
      %c0_15 = arith.constant 0 : index
      %26 = vector.load %arg5[%c0_14, %c0_15] : memref<8x512xf32, #tpu.memory_space<vmem>>, vector<8x512xf32>
      %c1_i32 = arith.constant 1 : i32
      %c0_i32_16 = arith.constant 0 : i32
      %27 = arith.addi %c1_i32, %c0_i32_16 : i32
      %c1_i32_17 = arith.constant 1 : i32
      %28 = scf.for %arg6 = %c1_i32 to %27 step %c1_i32_17 iter_args(%arg7 = %26) -> (vector<8x512xf32>)  : i32 {
        %c8_i32 = arith.constant 8 : i32
        %32 = arith.muli %arg6, %c8_i32 : i32
        %33 = tpu.assume_multiple %32, 8 : i32
        %34 = arith.index_cast %33 : i32 to index
        %c0_22 = arith.constant 0 : index
        %35 = vector.load %arg5[%34, %c0_22] : memref<8x512xf32, #tpu.memory_space<vmem>>, vector<8x512xf32>
        %36 = arith.addf %arg7, %35 : vector<8x512xf32>
        scf.yield %36 : vector<8x512xf32>
      }
      %c0_i32_18 = arith.constant 0 : i32
      %c0_19 = arith.constant 0 : index
      %c0_20 = arith.constant 0 : index
      %c0_21 = arith.constant 0 : index
      %29 = vector.load %arg4[%c0_19, %c0_20, %c0_21] : memref<1x8x512xf32, #tpu.memory_space<vmem>>, vector<1x8x512xf32>
      %30 = vector.shape_cast %29 : vector<1x8x512xf32> to vector<8x512xf32>
      %31 = vector.shape_cast %28 : vector<8x512xf32> to vector<1x8x512xf32>
      tpu.vector_store %arg4[%c0_19, %c0_20, %c0_21], %31 {strides = array<i32>} : memref<1x8x512xf32, #tpu.memory_space<vmem>>, vector<1x8x512xf32>,
    } else {
    }
    return
  }
  func.func @transform_0(%arg0: i32, %arg1: i32) -> (i32, i32) {
    %c1_i32 = arith.constant 1 : i32
    %0 = arith.muli %arg0, %c1_i32 : i32
    %1 = arith.addi %0, %arg1 : i32
    %c0_i32 = arith.constant 0 : i32
    %c0_i32_0 = arith.constant 0 : i32
    return %1, %c0_i32 : i32, i32
  }
  func.func @transform_1(%arg0: i32, %arg1: i32) -> (i32, i32) {
    %c1_i32 = arith.constant 1 : i32
    %0 = arith.muli %arg0, %c1_i32 : i32
    %1 = arith.addi %0, %arg1 : i32
    %c0_i32 = arith.constant 0 : i32
    %c0_i32_0 = arith.constant 0 : i32
    return %1, %c0_i32 : i32, i32
  }
  func.func @transform_2(%arg0: i32, %arg1: i32) -> (i32, i32, i32) {
    %c0_i32 = arith.constant 0 : i32
    %c0_i32_0 = arith.constant 0 : i32
    %c0_i32_1 = arith.constant 0 : i32
    return %arg0, %c0_i32, %c0_i32_0 : i32, i32, i32
  }
}

</mosaic_0001>

<llo_original>
// kernel: tpu_custom_call.1
$region0: #{tpu_custom_call.1}
  #allocation0 [shape = 'u32[]', space=smem, size = 0x4, offset = 0x4, fixed_abs, tag = 'smem constant byte address 0x4 - core index']
  #allocation1 [shape = 'u32[144,128]{1,0:T(1,128)}', space=vmem, size = 0x12000, scoped, tag = 'internal scratch']
  #allocation2 [shape = 'f32[8,512]{1,0:T(8,128)}', space=vmem, size = 0x4000, scoped, tag = 'scratch operand']
  %s0 = inlined_call_operand.hbm [shape: f32[16,512], index: 0, kind: input, shape index: {}]
  %s1 = inlined_call_operand.hbm [shape: f32[16,512], index: 1, kind: input, shape index: {}]
  %s2 = inlined_call_operand.hbm [shape: f32[2,8,512], index: 2, kind: output, shape index: {}]
  %s3 = sld [smem:[#allocation0]]
  $region57: #{tpu_custom_call.1} parent=0
    _
  %s5 = ssub.s32 1, %s3
  %s6 = scalar_select 0, %s5, %s3
  $region1: #{tpu_custom_call.1} parent=0
    #allocation3 [shape = 'u8[32768]{0}', space=vmem, size = 0x8000, scoped, tag = 'input window, operand 0']
    #allocation4 [shape = 's32[2]{0}', space=sflag, size = 0x8, scoped, tag = 'scoped memory for tpu_custom_call.1']
    #allocation5 [shape = 's32[2]{0}', space=sflag, size = 0x8, scoped, tag = 'scoped memory for tpu_custom_call.1']
    #allocation6 [shape = 'u8[32768]{0}', space=vmem, size = 0x8000, scoped, tag = 'input window, operand 1']
    #allocation7 [shape = 's32[2]{0}', space=sflag, size = 0x8, scoped, tag = 'scoped memory for tpu_custom_call.1']
    #allocation8 [shape = 'u8[32768]{0}', space=vmem, size = 0x8000, scoped, tag = 'output window, operand 0']
    %7 = vsyncpa [#allocation4], 0
    %s8 = scalar_lea.sflag [#allocation4], 1
    %9 = vsyncpa %s8, 0
    %10 = vsyncpa [#allocation7], 0
    %s11 = scalar_lea.sflag [#allocation7], 1
    %12 = vsyncpa %s11, 0
    %13 = vsyncpa [#allocation5], 0
    %s14 = scalar_lea.sflag [#allocation5], 1
    %15 = vsyncpa %s14, 0
    loop: start=0, step=1, limit=4
    $region2: #{tpu_custom_call.1} parent=1 // loop_pre_header
      _
    $region3: #{tpu_custom_call.1} parent=1 // loop_header
      %s17 = sphi 0, %s21
      %p18 = scmp.ge.s32.totalorder %s17, 4
      %s24 = sphi 0, %s36
      %s25 = sphi 0, %s32
      %s26 = sphi 0, %s24
      %s27 = sphi 0, %s25
      %s28 = sphi 0, %s26
      %s29 = sphi 0, %s27
      %s41 = sphi 0, %s43
      %s44 = sphi 0, %s41
      %s45 = sphi 0, %s44
      %s61 = sphi 0, %s45
      %s69 = sphi 0, %s71
      %s72 = sphi 0, %s69
      %s73 = sphi 0, %s72
      %s89 = sphi 0, %s73
      %s95 = sphi 0, %s97
      %s98 = sphi 0, %s95
      %s99 = sphi 0, %s98
      %s115 = sphi 0, %s99
    $region4: #{tpu_custom_call.1} parent=1 // loop_header_branch
      %20 = sbr.rel (%p18) target = $region8
    $region5: #{tpu_custom_call.1} parent=1 // loop_body
      %s22 = ssub.s32 %s17, 1
      %s23 = ssub.s32 %s17, 2
      %s30 = sadd.s32 1, %s25
      %p31 = scmp.ge.s32.totalorder %s30, 1
      %s32 = scalar_select %p31, 0, %s30
      %s33 = sadd.s32 1, %s24
      %s34 = scalar_select %p31, %s33, %s24
      %p35 = scmp.ge.s32.totalorder %s34, 2
      %s36 = scalar_select %p35, 0, %s34
      %s37 = sadd.s32 %s24, %s25
      %s38 = sadd.s32 %s36, %s32
      %s39 = ssub.s32 %s37, %s38
      %p40 = scmp.eq.s32.totalorder %s39, 0
      %s42 = sadd.s32 %s41, 1
      %s43 = scalar_select %p40, %s41, %s42
      %p46 = pneg %p40
      %p47 = scmp.eq.s32.totalorder %s17, 1
      %p48 = por %p46, %p47
      %p49 = scmp.ne.s32.totalorder %s41, %s44
      %p50 = scmp.eq.s32.totalorder %s17, 0
      %p51 = por %p49, %p50
      %p52 = scmp.ne.s32.totalorder %s41, %s44
      %p53 = scmp.eq.s32.totalorder %s22, 1
      %p54 = por %p52, %p53
      %p55 = scmp.ne.s32.totalorder %s44, %s45
      %p56 = scmp.eq.s32.totalorder %s22, 0
      %p57 = por %p55, %p56
      %p58 = scmp.ne.s32.totalorder %s44, %s45
      %p59 = scmp.eq.s32.totalorder %s23, 1
      %p60 = por %p58, %p59
      %p62 = scmp.ne.s32.totalorder %s45, %s61
      %p63 = scmp.eq.s32.totalorder %s23, 0
      %p64 = por %p62, %p63
      %s65 = sadd.s32 %s24, %s25
      %s66 = sadd.s32 %s36, %s32
      %s67 = ssub.s32 %s65, %s66
      %p68 = scmp.eq.s32.totalorder %s67, 0
      %s70 = sadd.s32 %s69, 1
      %s71 = scalar_select %p68, %s69, %s70
      %p74 = pneg %p68
      %p75 = scmp.eq.s32.totalorder %s17, 1
      %p76 = por %p74, %p75
      %p77 = scmp.ne.s32.totalorder %s69, %s72
      %p78 = scmp.eq.s32.totalorder %s17, 0
      %p79 = por %p77, %p78
      %p80 = scmp.ne.s32.totalorder %s69, %s72
      %p81 = scmp.eq.s32.totalorder %s22, 1
      %p82 = por %p80, %p81
      %p83 = scmp.ne.s32.totalorder %s72, %s73
      %p84 = scmp.eq.s32.totalorder %s22, 0
      %p85 = por %p83, %p84
      %p86 = scmp.ne.s32.totalorder %s72, %s73
      %p87 = scmp.eq.s32.totalorder %s23, 1
      %p88 = por %p86, %p87
      %p90 = scmp.ne.s32.totalorder %s73, %s89
      %p91 = scmp.eq.s32.totalorder %s23, 0
      %p92 = por %p90, %p91
      %s93 = ssub.s32 %s24, %s36
      %p94 = scmp.eq.s32.totalorder %s93, 0
      %s96 = sadd.s32 %s95, 1
      %s97 = scalar_select %p94, %s95, %s96
      %p100 = pneg %p94
      %p101 = scmp.eq.s32.totalorder %s17, 1
      %p102 = por %p100, %p101
      %p103 = scmp.ne.s32.totalorder %s95, %s98
      %p104 = scmp.eq.s32.totalorder %s17, 0
      %p105 = por %p103, %p104
      %p106 = scmp.ne.s32.totalorder %s95, %s98
      %p107 = scmp.eq.s32.totalorder %s22, 1
      %p108 = por %p106, %p107
      %p109 = scmp.ne.s32.totalorder %s98, %s99
      %p110 = scmp.eq.s32.totalorder %s22, 0
      %p111 = por %p109, %p110
      %p112 = scmp.ne.s32.totalorder %s98, %s99
      %p113 = scmp.eq.s32.totalorder %s23, 1
      %p114 = por %p112, %p113
      %p116 = scmp.ne.s32.totalorder %s99, %s115
      %p117 = scmp.eq.s32.totalorder %s23, 0
      %p118 = por %p116, %p117
      %p119 = scmp.le.s32.totalorder 1, %s17
      %p120 = scmp.lt.s32.totalorder %s17, 3
      %p121 = pnand %p119, %p120
      %p122 = pneg %p121
      // Predicated region
      $region9: #{tpu_custom_call.1} parent=5 // pred_check
        _
      $region10: #{tpu_custom_call.1} parent=5 // pred_check_branch
        %124 = sbr.rel (%p121) target = $region12
      $region11: #{tpu_custom_call.1} parent=5 // pred_region
        %s125 = ssub.s32 %s17, 1
      $region12: #{tpu_custom_call.1} parent=5 // pred_fallthru
        _
      %p126 = scmp.lt.s32.totalorder %s17, 2
      // Predicated region
      $region13: #{tpu_custom_call.1} parent=5 // pred_check
        %p127 = pneg %p126
      $region14: #{tpu_custom_call.1} parent=5 // pred_check_branch
        %129 = sbr.rel (%p127) target = $region16
      $region15: #{tpu_custom_call.1} parent=5 // pred_region
        // Predicated region
        $region17: #{tpu_custom_call.1} parent=15 // pred_check
          %p130 = pneg %p51
        $region18: #{tpu_custom_call.1} parent=15 // pred_check_branch
          %132 = sbr.rel (%p130) target = $region20
        $region19: #{tpu_custom_call.1} parent=15 // pred_region
          %s133 = sand.u32 %s41, 1
          %s134 = scalar_lea.sflag [#allocation4], %s133
          %s135 = sand.u32 %s41, 1
          %s136 = smul.addr %s135, 32
          %s137 = scalar_lea.vmem [#allocation3], %s136
          %s138 = sadd.s32 %s24, %s25
          %s140 = ssub.s32 512, 512
          %141 = vsyncadd %s134, %s140
          %s142 = smul.addr %s138, 4
          %s143 = smul.addr %s142, 128
          %s144 = scalar_lea.hbm %s0, %s143
          %s146 = sshll.u32 %s137, 4
          %s147 = int_to_ptr.vmem [resolvable:$true] %s146
          %149 = dma.hbm_to_vmem [thread:$0]  %s144, 512, %s147, %s134
        $region20: #{tpu_custom_call.1} parent=15 // pred_fallthru
          _
        // Predicated region
        $region21: #{tpu_custom_call.1} parent=15 // pred_check
          %p150 = pneg %p79
        $region22: #{tpu_custom_call.1} parent=15 // pred_check_branch
          %152 = sbr.rel (%p150) target = $region24
        $region23: #{tpu_custom_call.1} parent=15 // pred_region
          %s153 = sand.u32 %s69, 1
          %s154 = scalar_lea.sflag [#allocation7], %s153
          %s155 = sand.u32 %s69, 1
          %s156 = smul.addr %s155, 32
          %s157 = scalar_lea.vmem [#allocation6], %s156
          %s158 = sadd.s32 %s24, %s25
          %s160 = ssub.s32 512, 512
          %161 = vsyncadd %s154, %s160
          %s162 = smul.addr %s158, 4
          %s163 = smul.addr %s162, 128
          %s164 = scalar_lea.hbm %s1, %s163
          %s166 = sshll.u32 %s157, 4
          %s167 = int_to_ptr.vmem [resolvable:$true] %s166
          %169 = dma.hbm_to_vmem [thread:$0]  %s164, 512, %s167, %s154
        $region24: #{tpu_custom_call.1} parent=15 // pred_fallthru
          _
      $region16: #{tpu_custom_call.1} parent=5 // pred_fallthru
        _
      %p170 = scmp.le.s32.totalorder 1, %s17
      %p171 = scmp.lt.s32.totalorder %s17, 3
      %p172 = pnand %p170, %p171
      %p173 = pneg %p172
      // Predicated region
      $region25: #{tpu_custom_call.1} parent=5 // pred_check
        _
      $region26: #{tpu_custom_call.1} parent=5 // pred_check_branch
        %175 = sbr.rel (%p172) target = $region28
      $region27: #{tpu_custom_call.1} parent=5 // pred_region
        %s176 = ssub.s32 %s17, 1
        %s177 = sand.u32 %s44, 1
        %s178 = scalar_lea.sflag [#allocation4], %s177
        %s179 = sand.u32 %s44, 1
        %s180 = smul.addr %s179, 32
        %s181 = scalar_lea.vmem [#allocation3], %s180
        // Predicated region
        $region29: #{tpu_custom_call.1} parent=27 // pred_check
          %p182 = pneg %p57
        $region30: #{tpu_custom_call.1} parent=27 // pred_check_branch
          %184 = sbr.rel (%p182) target = $region32
        $region31: #{tpu_custom_call.1} parent=27 // pred_region
          %185 = dma.done %s178, 512
        $region32: #{tpu_custom_call.1} parent=27 // pred_fallthru
          _
        %s186 = sand.u32 %s72, 1
        %s187 = scalar_lea.sflag [#allocation7], %s186
        %s188 = sand.u32 %s72, 1
        %s189 = smul.addr %s188, 32
        %s190 = scalar_lea.vmem [#allocation6], %s189
        // Predicated region
        $region33: #{tpu_custom_call.1} parent=27 // pred_check
          %p191 = pneg %p85
        $region34: #{tpu_custom_call.1} parent=27 // pred_check_branch
          %193 = sbr.rel (%p191) target = $region36
        $region35: #{tpu_custom_call.1} parent=27 // pred_region
          %194 = dma.done %s187, 512
        $region36: #{tpu_custom_call.1} parent=27 // pred_fallthru
          _
        %s195 = sand.u32 %s44, 1
        %s196 = scalar_lea.sflag [#allocation4], %s195
        %s197 = sand.u32 %s44, 1
        %s198 = smul.addr %s197, 32
        %s199 = scalar_lea.vmem [#allocation3], %s198
        %p200 = pneg %p57
        %p201 = pneg %p54
        %s202 = sand.u32 %s72, 1
        %s203 = scalar_lea.sflag [#allocation7], %s202
        %s204 = sand.u32 %s72, 1
        %s205 = smul.addr %s204, 32
        %s206 = scalar_lea.vmem [#allocation6], %s205
        %p207 = pneg %p85
        %p208 = pneg %p82
        %p209 = pneg %p111
        %p210 = pneg %p108
        %s211 = sand.u32 %s98, 1
        %s212 = scalar_lea.sflag [#allocation5], %s211
        %s213 = sand.u32 %s98, 1
        %s214 = smul.addr %s213, 32
        %s215 = scalar_lea.vmem [#allocation8], %s214
        %s216 = sadd.s32 %s26, %s27
        %s217 = sadd.s32 %s26, %s27
        %p218 = scmp.eq.s32.totalorder %s27, 0
        // Predicated region
        $region37: #{tpu_custom_call.1} parent=27 // pred_check
          %p219 = pneg %p218
        $region38: #{tpu_custom_call.1} parent=27 // pred_check_branch
          %221 = sbr.rel (%p219) target = $region40
        $region39: #{tpu_custom_call.1} parent=27 // pred_region
          %222 = vst [vmem:[#allocation2] sm:$0xff] 0.0
          %223 = vst [vmem:[#allocation2 + $0x8] sm:$0xff] 0.0
          %224 = vst [vmem:[#allocation2 + $0x10] sm:$0xff] 0.0
          %225 = vst [vmem:[#allocation2 + $0x18] sm:$0xff] 0.0
        $region40: #{tpu_custom_call.1} parent=27 // pred_fallthru
          _
        %v226 = vld [vmem:[%s181] sm:$0xff]
        %v227 = vld [vmem:[%s181 + $0x8] sm:$0xff]
        %v228 = vld [vmem:[%s181 + $0x10] sm:$0xff]
        %v229 = vld [vmem:[%s181 + $0x18] sm:$0xff]
        %v230 = vld [vmem:[%s190] sm:$0xff]
        %v231 = vld [vmem:[%s190 + $0x8] sm:$0xff]
        %v232 = vld [vmem:[%s190 + $0x10] sm:$0xff]
        %v233 = vld [vmem:[%s190 + $0x18] sm:$0xff]
        %v234 = vlog2.pop %v230
        %v235 = vmul.f32 %v234, 0.6931472
        %v236 = vlog2.pop %v231
        %v237 = vmul.f32 %v236, 0.6931472
        %v238 = vlog2.pop %v232
        %v239 = vmul.f32 %v238, 0.6931472
        %v240 = vlog2.pop %v233
        %v241 = vmul.f32 %v240, 0.6931472
        %v242 = vmax.f32 %v235, -100.0
        %v243 = vmax.f32 %v237, -100.0
        %v244 = vmax.f32 %v239, -100.0
        %v245 = vmax.f32 %v241, -100.0
        %v246 = vsub.f32 1.0, %v230
        %v247 = vsub.f32 1.0, %v231
        %v248 = vsub.f32 1.0, %v232
        %v249 = vsub.f32 1.0, %v233
        %v250 = vlog2.pop %v246
        %v251 = vmul.f32 %v250, 0.6931472
        %v252 = vlog2.pop %v247
        %v253 = vmul.f32 %v252, 0.6931472
        %v254 = vlog2.pop %v248
        %v255 = vmul.f32 %v254, 0.6931472
        %v256 = vlog2.pop %v249
        %v257 = vmul.f32 %v256, 0.6931472
        %v258 = vmax.f32 %v251, -100.0
        %v259 = vmax.f32 %v253, -100.0
        %v260 = vmax.f32 %v255, -100.0
        %v261 = vmax.f32 %v257, -100.0
        %v262 = vmul.f32 %v226, %v242
        %v263 = vmul.f32 %v227, %v243
        %v264 = vmul.f32 %v228, %v244
        %v265 = vmul.f32 %v229, %v245
        %v266 = vsub.f32 1.0, %v226
        %v267 = vsub.f32 1.0, %v227
        %v268 = vsub.f32 1.0, %v228
        %v269 = vsub.f32 1.0, %v229
        %v270 = vmul.f32 %v266, %v258
        %v271 = vmul.f32 %v267, %v259
        %v272 = vmul.f32 %v268, %v260
        %v273 = vmul.f32 %v269, %v261
        %v274 = vadd.f32 %v262, %v270
        %v275 = vadd.f32 %v263, %v271
        %v276 = vadd.f32 %v264, %v272
        %v277 = vadd.f32 %v265, %v273
        %v278 = vsub.f32 0.0, %v274
        %v279 = vsub.f32 0.0, %v275
        %v280 = vsub.f32 0.0, %v276
        %v281 = vsub.f32 0.0, %v277
        %v282 = vld [vmem:[#allocation2] sm:$0xff]
        %v283 = vld [vmem:[#allocation2 + $0x8] sm:$0xff]
        %v284 = vld [vmem:[#allocation2 + $0x10] sm:$0xff]
        %v285 = vld [vmem:[#allocation2 + $0x18] sm:$0xff]
        %v286 = vadd.f32 %v282, %v278
        %v287 = vadd.f32 %v283, %v279
        %v288 = vadd.f32 %v284, %v280
        %v289 = vadd.f32 %v285, %v281
        %290 = vst [vmem:[#allocation2] sm:$0xff] %v286
        %291 = vst [vmem:[#allocation2 + $0x8] sm:$0xff] %v287
        %292 = vst [vmem:[#allocation2 + $0x10] sm:$0xff] %v288
        %293 = vst [vmem:[#allocation2 + $0x18] sm:$0xff] %v289
        // Predicated region
        $region41: #{tpu_custom_call.1} parent=27 // pred_check
          %p294 = pneg %p218
        $region42: #{tpu_custom_call.1} parent=27 // pred_check_branch
          %296 = sbr.rel (%p294) target = $region44
        $region43: #{tpu_custom_call.1} parent=27 // pred_region
          %v297 = vld [vmem:[#allocation2] sm:$0xff]
          %v298 = vld [vmem:[#allocation2 + $0x8] sm:$0xff]
          %v299 = vld [vmem:[#allocation2 + $0x10] sm:$0xff]
          %v300 = vld [vmem:[#allocation2 + $0x18] sm:$0xff]
          %301 = vst [vmem:[%s215] sm:$0xff] %v297
          %302 = vst [vmem:[%s215 + $0x8] sm:$0xff] %v298
          %303 = vst [vmem:[%s215 + $0x10] sm:$0xff] %v299
          %304 = vst [vmem:[%s215 + $0x18] sm:$0xff] %v300
        $region44: #{tpu_custom_call.1} parent=27 // pred_fallthru
          _
        %s305 = sand.u32 %s98, 1
        %s306 = scalar_lea.sflag [#allocation5], %s305
        %s307 = sand.u32 %s98, 1
        %s308 = smul.addr %s307, 32
        %s309 = scalar_lea.vmem [#allocation8], %s308
        // Predicated region
        $region45: #{tpu_custom_call.1} parent=27 // pred_check
          %p310 = pneg %p108
        $region46: #{tpu_custom_call.1} parent=27 // pred_check_branch
          %312 = sbr.rel (%p310) target = $region48
        $region47: #{tpu_custom_call.1} parent=27 // pred_region
          %s314 = ssub.s32 512, 512
          %315 = vsyncadd %s306, %s314
          %s316 = smul.addr %s26, 4
          %s317 = smul.addr %s316, 128
          %s318 = scalar_lea.hbm %s2, %s317
          %s320 = sshll.u32 %s309, 4
          %s321 = int_to_ptr.vmem [resolvable:$true] %s320
          %323 = dma.vmem_to_hbm [thread:$0]  %s321, 512, %s318, %s306
        $region48: #{tpu_custom_call.1} parent=27 // pred_fallthru
          _
      $region28: #{tpu_custom_call.1} parent=5 // pred_fallthru
        _
      %p324 = scmp.le.s32.totalorder 2, %s17
      // Predicated region
      $region49: #{tpu_custom_call.1} parent=5 // pred_check
        %p325 = pneg %p324
      $region50: #{tpu_custom_call.1} parent=5 // pred_check_branch
        %327 = sbr.rel (%p325) target = $region52
      $region51: #{tpu_custom_call.1} parent=5 // pred_region
        %s328 = ssub.s32 %s17, 2
        // Predicated region
        $region53: #{tpu_custom_call.1} parent=51 // pred_check
          %p329 = pneg %p114
        $region54: #{tpu_custom_call.1} parent=51 // pred_check_branch
          %331 = sbr.rel (%p329) target = $region56
        $region55: #{tpu_custom_call.1} parent=51 // pred_region
          %s332 = sand.u32 %s99, 1
          %s333 = scalar_lea.sflag [#allocation5], %s332
          %s334 = sand.u32 %s99, 1
          %s335 = smul.addr %s334, 32
          %s336 = scalar_lea.vmem [#allocation8], %s335
          %337 = dma.done %s333, 512
        $region56: #{tpu_custom_call.1} parent=51 // pred_fallthru
          _
      $region52: #{tpu_custom_call.1} parent=5 // pred_fallthru
        _
    $region6: #{tpu_custom_call.1} parent=1 // loop_footer
      %s21 = sadd.s32 1, %s17
    $region7: #{tpu_custom_call.1} parent=1 // loop_footer_branch
      %16 = sbr.rel target = $region3
    $region8: #{tpu_custom_call.1} parent=1 // loop_exit
      _
    %338 = vsyncpa [#allocation4], 1
    %s339 = scalar_lea.sflag [#allocation4], 1
    %340 = vsyncpa %s339, 1
    %341 = vsyncpa [#allocation7], 1
    %s342 = scalar_lea.sflag [#allocation7], 1
    %343 = vsyncpa %s342, 1
    %344 = vsyncpa [#allocation5], 1
    %s345 = scalar_lea.sflag [#allocation5], 1
    %346 = vsyncpa %s345, 1

</llo_original>
